<compile_context>
chip_gen: v7x
topology: tpu7x:2x2x1
jax: 0.10.0
libtpu: 0.0.40
codegen_flags: <defaults>
</compile_context>

<pallas_src>
import jax
import jax.numpy as jnp
from jax import lax
from jax.experimental import pallas as pl
from jax.experimental.pallas import tpu as pltpu


def _round_up(a, m):
    return ((a + m - 1) // m) * m


def _cdiv(a, b):
    return -(-a // b)


# ---------------------------------------------------------------------------
# Pallas kernels: per-pixel channel mix (Linear over channels) + folded BN
# ---------------------------------------------------------------------------

def _cpa_kernel_res(x_ref, w_ref, shift_ref, sc_ref, o_ref):
    # x_ref : (Bb, Cin, tp)  channels on sublanes, pixels on lanes
    # w_ref : (dim, Cin)     BN scale already folded in
    # shift : (dim, 1)       folded BN shift (+ linear bias), f32
    # sc_ref: (Bb, dim, tp)  residual (cnn output), same dtype as output
    w = w_ref[...]
    shift = shift_ref[...]
    for i in range(x_ref.shape[0]):            # Bb is a small static constant
        y = jnp.dot(w, x_ref[i], preferred_element_type=jnp.float32) + shift
        # residual add in the output dtype (bf16 add on v6e/v7x; no-op for f32)
        o_ref[i] = y.astype(o_ref.dtype) + sc_ref[i]


def _cpa_kernel_nores(x_ref, w_ref, shift_ref, o_ref):
    w = w_ref[...]
    shift = shift_ref[...]
    for i in range(x_ref.shape[0]):
        y = jnp.dot(w, x_ref[i], preferred_element_type=jnp.float32) + shift
        o_ref[i] = y.astype(o_ref.dtype)


def _vmem_limit_bytes():
    """Per-chip scoped VMEM limit: generous on v5e/v6e (128 MiB physical),
    conservative on v7x (64 MiB per TC)."""
    try:
        cap = int(pltpu.get_tpu_info().vmem_capacity_bytes)
    except Exception:
        cap = 64 * 1024 * 1024
    return min(cap * 3 // 4, 100 * 1024 * 1024)


# ---------------------------------------------------------------------------
# CPA.forward (stride=1 / same=False path) using the Pallas kernel
# ---------------------------------------------------------------------------

def cpa_forward(x, sc_x, params, *, stride=1, same=False, sc_flag=True,
                final=False, use_bn=True, eps=1e-5, tile_p=4096):
    if stride == 2 or same:
        # TODO(synk): cp_ffc_sc shortcut + bn_sc + avgpool/upsample path.
        raise NotImplementedError("stride==2 / same==True CPA path not implemented")

    B, Cin, H, W = map(int, x.shape)
    w = params["w"]                        # (dim, in_dim), PyTorch Linear layout
    dim = int(w.shape[0])
    P = H * W

    # ---- fold Linear bias + eval-mode BN into (weight scale, shift) ----
    if use_bn:
        inv_std = 1.0 / jnp.sqrt(params["running_var"].astype(jnp.float32) + eps)
        scale = params["gamma"].astype(jnp.float32) * inv_std
        shift = params["beta"].astype(jnp.float32) + \
            (params["b"].astype(jnp.float32) -
             params["running_mean"].astype(jnp.float32)) * scale
    else:
        scale = jnp.ones((dim,), jnp.float32)
        shift = params["b"].astype(jnp.float32)
    w_fold = (w.astype(jnp.float32) * scale[:, None]).astype(x.dtype)  # (dim, Cin)
    shift = shift.reshape(dim, 1)                                      # (dim, 1) f32

    # residual applies only when out.shape == sc_x.shape (PyTorch semantics)
    residual = bool(sc_flag) and (tuple(sc_x.shape) == (B, dim, H, W))

    # ---- channels-first views: no transposes, pixels land on the lane axis ----
    x3 = x.reshape(B, Cin, P)
    sc3 = sc_x.astype(x.dtype).reshape(B, dim, P) if residual else None

    # ---- tile sizing: count EVERY double-buffered stream (incl. output) ----
    itemsize = jnp.dtype(x.dtype).itemsize
    vmem_limit = _vmem_limit_bytes()
    tile_budget = vmem_limit - 2 * 1024 * 1024            # headroom for scratch
    # per-pixel-column bytes per image: x block + residual block + output block
    col_bytes = (Cin + dim + (dim if residual else 0)) * itemsize
    # resident weight + shift (double-buffered as well, but tiny)
    fixed_bytes = 2 * (dim * Cin * itemsize + dim * 4)

    P128 = _round_up(P, 128)
    tp_cap = max(128, ((tile_budget - fixed_bytes) // (2 * col_bytes)) // 128 * 128)
    tp = max(128, min(max(128, (int(tile_p) // 128) * 128), tp_cap, P128))
    n_ptiles = _cdiv(P, tp)

    # ---- small-P regime: block several batch images per grid step ----
    Bb = 1
    if n_ptiles == 1 and B > 1:
        divs = [d for d in range(B, 0, -1) if B % d == 0]
        fitting = [d for d in divs
                   if 2 * d * tp * col_bytes + fixed_bytes <= tile_budget] or [1]
        good = [d for d in fitting if (B // d) * n_ptiles >= 2]
        Bb = good[0] if good else fitting[0]

    # ---- guarantee >= 2 grid steps so both v7x TensorCores get work ----
    if (B // Bb) * n_ptiles < 2 and tp > 128:
        tp_half = max(128, _round_up(tp // 2, 128))
        if _cdiv(P, tp_half) >= 2:
            tp = tp_half
            n_ptiles = _cdiv(P, tp)

    grid = (B // Bb, n_ptiles)

    in_specs = [
        pl.BlockSpec((Bb, Cin, tp), lambda b, j: (b, 0, j)),   # x pixels
        pl.BlockSpec((dim, Cin), lambda b, j: (0, 0)),         # folded weight
        pl.BlockSpec((dim, 1), lambda b, j: (0, 0)),           # folded shift
    ]
    args = [x3, w_fold, shift]
    if residual:
        in_specs.append(pl.BlockSpec((Bb, dim, tp), lambda b, j: (b, 0, j)))
        args.append(sc3)
        kernel = _cpa_kernel_res
    else:
        kernel = _cpa_kernel_nores

    # memory-bound cost hint for XLA's scheduler
    hbm_bytes = B * P * col_bytes + dim * Cin * itemsize + dim * 4
    cost = pl.CostEstimate(flops=2 * B * dim * Cin * P,
                           transcendentals=0,
                           bytes_accessed=hbm_bytes)

    out3 = pl.pallas_call(
        kernel,
        out_shape=jax.ShapeDtypeStruct((B, dim, P), x.dtype),
        grid_spec=pltpu.PrefetchScalarGridSpec(
            num_scalar_prefetch=0,
            grid=grid,
            in_specs=in_specs,
            out_specs=pl.BlockSpec((Bb, dim, tp), lambda b, j: (b, 0, j)),
        ),
        compiler_params=pltpu.CompilerParams(
            dimension_semantics=("parallel", "parallel"),
            vmem_limit_bytes=vmem_limit),
        cost_estimate=cost,
    )(*args)

    return out3.reshape(B, dim, H, W)


# ---------------------------------------------------------------------------
# upa_block: cnn (Conv3x3-BN-ReLU x2, plain JAX) + CPA (Pallas) + optional cat
# ---------------------------------------------------------------------------

def _bn_eval(y, gamma, beta, mean, var, eps=1e-5):
    inv = 1.0 / jnp.sqrt(var + eps)
    return (y - mean.reshape(1, -1, 1, 1)) * (gamma * inv).reshape(1, -1, 1, 1) \
        + beta.reshape(1, -1, 1, 1)


def _conv3x3(x, w):
    return lax.conv_general_dilated(
        x, w, window_strides=(1, 1), padding=((1, 1), (1, 1)),
        dimension_numbers=("NCHW", "OIHW", "NCHW"))


def _cnn_forward(x, p, eps=1e-5):
    # TODO(synk): 3x3 conv / BN / ReLU stack is left to XLA's conv (no
    #             hand-written Pallas conv kernel here).
    y = _conv3x3(x, p["w1"])
    y = jnp.maximum(_bn_eval(y, p["g1"], p["b1"], p["m1"], p["v1"], eps), 0.0)
    y = _conv3x3(y, p["w2"])
    y = jnp.maximum(_bn_eval(y, p["g2"], p["b2"], p["m2"], p["v2"], eps), 0.0)
    return y


def upa_block_forward(x, params, *, stride=1, same=False, cat=False, eps=1e-5,
                      cpa_dtype=None):
    sc = _cnn_forward(x, params["cnn"], eps)
    xq = x if cpa_dtype is None else x.astype(cpa_dtype)
    scq = sc if cpa_dtype is None else sc.astype(cpa_dtype)
    out = cpa_forward(xq, scq, params["cpa"], stride=stride, same=same,
                      sc_flag=True, final=False, use_bn=True, eps=eps)
    if cat:
        out = jnp.concatenate([x.astype(out.dtype), out], axis=1)
    return out


# ---------------------------------------------------------------------------
# Synthetic parameters + pure-JAX reference
# ---------------------------------------------------------------------------

def _make_params(key, in_planes, planes, w_mult=2):
    ks = jax.random.split(key, 4)
    mid = planes * w_mult

    def bn_stats(n):
        return (1.0 + 0.01 * jnp.arange(n, dtype=jnp.float32),   # gamma
                0.02 * jnp.arange(n, dtype=jnp.float32),          # beta
                0.01 * jnp.arange(n, dtype=jnp.float32),          # running_mean
                1.0 + 0.03 * jnp.arange(n, dtype=jnp.float32))    # running_var

    g1, b1, m1, v1 = bn_stats(mid)
    g2, b2, m2, v2 = bn_stats(planes)
    cnn = dict(
        w1=jax.random.normal(ks[0], (mid, in_planes, 3, 3), jnp.float32) * 0.1,
        g1=g1, b1=b1, m1=m1, v1=v1,
        w2=jax.random.normal(ks[1], (planes, mid, 3, 3), jnp.float32) * 0.1,
        g2=g2, b2=b2, m2=m2, v2=v2,
    )
    gc, bc, mc, vc = bn_stats(planes)
    cpa = dict(
        w=jax.random.normal(ks[2], (planes, in_planes), jnp.float32) * 0.1,
        b=jax.random.normal(ks[3], (planes,), jnp.float32) * 0.1,
        gamma=gc, beta=bc, running_mean=mc, running_var=vc,
    )
    return dict(cnn=cnn, cpa=cpa)


def _reference_upa_block(x, params, *, cat=False, eps=1e-5):
    sc = _cnn_forward(x, params["cnn"], eps)
    p = params["cpa"]
    dim = p["w"].shape[0]
    out = jnp.einsum("bchw,dc->bdhw", x, p["w"]) + p["b"].reshape(1, dim, 1, 1)
    out = _bn_eval(out, p["gamma"], p["beta"], p["running_mean"],
                   p["running_var"], eps)
    if out.shape == sc.shape:
        out = sc + out
    if cat:
        out = jnp.concatenate([x, out], axis=1)
    return out


if __name__ == "__main__":
    key = jax.random.PRNGKey(0)
    k_x, k_p = jax.random.split(key)

    B, in_planes, planes, H, W = 2, 8, 8, 16, 16
    x = jax.random.normal(k_x, (B, in_planes, H, W), jnp.float32)
    params = _make_params(k_p, in_planes, planes)

    # 1) f32, P = 256 (exact multiple of 128)
    out = jax.block_until_ready(upa_block_forward(x, params))
    ref = _reference_upa_block(x, params)
    assert out.shape == ref.shape, (out.shape, ref.shape)
    err = float(jnp.max(jnp.abs(out - ref)))
    assert jnp.allclose(out, ref, atol=2e-3, rtol=2e-3), f"f32 mismatch {err}"

    # 2) f32 with channel concat (cat=True)
    out_c = jax.block_until_ready(upa_block_forward(x, params, cat=True))
    ref_c = _reference_upa_block(x, params, cat=True)
    assert out_c.shape == ref_c.shape, (out_c.shape, ref_c.shape)
    assert jnp.allclose(out_c, ref_c, atol=2e-3, rtol=2e-3), "cat mismatch"

    # 3) f32, P = 144 (NOT a multiple of 128) -> exercises partial pixel block
    x2 = jax.random.normal(jax.random.PRNGKey(1), (B, in_planes, 12, 12),
                           jnp.float32)
    out2 = jax.block_until_ready(upa_block_forward(x2, params))
    ref2 = _reference_upa_block(x2, params)
    assert out2.shape == ref2.shape, (out2.shape, ref2.shape)
    err2 = float(jnp.max(jnp.abs(out2 - ref2)))
    assert jnp.allclose(out2, ref2, atol=2e-3, rtol=2e-3), f"partial-block mismatch {err2}"

    # 4) bf16 hot path (kernel is HBM-bound; halving bytes ~ halves wall time)
    out_bf = jax.block_until_ready(
        upa_block_forward(x, params, cpa_dtype=jnp.bfloat16))
    assert out_bf.dtype == jnp.bfloat16
    err_bf = float(jnp.max(jnp.abs(out_bf.astype(jnp.float32) - ref)))
    assert err_bf < 0.25, f"bf16 mismatch {err_bf}"

    print("KERNEL_OK")
</pallas_src>

<mosaic_0001>
module attributes {stable_mosaic.version = 11 : i64} {
  func.func @_cpa_kernel_res(%arg0: i32, %arg1: i32, %arg2: memref<1x8x256xf32, #tpu.memory_space<vmem>>, %arg3: memref<8x8xf32, #tpu.memory_space<vmem>>, %arg4: memref<8x1xf32, #tpu.memory_space<vmem>>, %arg5: memref<1x8x256xf32, #tpu.memory_space<vmem>>, %arg6: memref<1x8x256xf32, #tpu.memory_space<vmem>>) attributes {dimension_semantics = [#tpu.dimension_semantics<parallel>, #tpu.dimension_semantics<parallel>], iteration_bounds = array<i64: 2, 1>, scalar_prefetch = 0 : i64, scratch_operands = 0 : i64, tpu.core_type = #tpu.core_type<tc>, window_params = [{transform_indices = @transform_0, window_bounds = array<i64: 1, 8, 256>}, {pipeline_mode = #tpu.pipeline_mode<synchronous>, transform_indices = @transform_1, window_bounds = array<i64: 8, 8>}, {pipeline_mode = #tpu.pipeline_mode<synchronous>, transform_indices = @transform_2, window_bounds = array<i64: 8, 1>}, {transform_indices = @transform_3, window_bounds = array<i64: 1, 8, 256>}, {transform_indices = @transform_4, window_bounds = array<i64: 1, 8, 256>}]} {
    %c0 = arith.constant 0 : index
    %c0_0 = arith.constant 0 : index
    %0 = vector.load %arg3[%c0, %c0_0] : memref<8x8xf32, #tpu.memory_space<vmem>>, vector<8x8xf32>
    %c0_1 = arith.constant 0 : index
    %c0_2 = arith.constant 0 : index
    %1 = vector.load %arg4[%c0_1, %c0_2] : memref<8x1xf32, #tpu.memory_space<vmem>>, vector<8x1xf32>
    %c0_3 = arith.constant 0 : index
    %c0_4 = arith.constant 0 : index
    %c0_5 = arith.constant 0 : index
    %2 = vector.load %arg2[%c0_3, %c0_4, %c0_5] : memref<1x8x256xf32, #tpu.memory_space<vmem>>, vector<1x8x256xf32>
    %3 = vector.shape_cast %2 : vector<1x8x256xf32> to vector<8x256xf32>
    %cst = arith.constant dense<0.000000e+00> : vector<8x256xf32>
    %4 = tpu.matmul %0, %3, %cst {dimension_numbers = #tpu.dot_dimension_numbers<[1], [0], [0], [1], [0, 0, 1, 1], [], []>} : vector<8x8xf32>, vector<8x256xf32>, vector<8x256xf32> -> vector<8x256xf32>
    %5 = vector.broadcast %1 : vector<8x1xf32> to vector<8x256xf32>
    %6 = arith.addf %4, %5 : vector<8x256xf32>
    %c0_6 = arith.constant 0 : index
    %c0_7 = arith.constant 0 : index
    %c0_8 = arith.constant 0 : index
    %7 = vector.load %arg5[%c0_6, %c0_7, %c0_8] : memref<1x8x256xf32, #tpu.memory_space<vmem>>, vector<1x8x256xf32>
    %8 = vector.shape_cast %7 : vector<1x8x256xf32> to vector<8x256xf32>
    %9 = arith.addf %6, %8 : vector<8x256xf32>
    %c0_9 = arith.constant 0 : index
    %c0_10 = arith.constant 0 : index
    %c0_11 = arith.constant 0 : index
    %10 = vector.load %arg6[%c0_9, %c0_10, %c0_11] : memref<1x8x256xf32, #tpu.memory_space<vmem>>, vector<1x8x256xf32>
    %11 = vector.shape_cast %10 : vector<1x8x256xf32> to vector<8x256xf32>
    %12 = vector.shape_cast %9 : vector<8x256xf32> to vector<1x8x256xf32>
    tpu.vector_store %arg6[%c0_9, %c0_10, %c0_11], %12 {strides = array<i32>} : memref<1x8x256xf32, #tpu.memory_space<vmem>>, vector<1x8x256xf32>,
    return
  }
  func.func @transform_0(%arg0: i32, %arg1: i32) -> (i32, i32, i32) {
    %c0_i32 = arith.constant 0 : i32
    %c0_i32_0 = arith.constant 0 : i32
    return %arg0, %c0_i32, %arg1 : i32, i32, i32
  }
  func.func @transform_1(%arg0: i32, %arg1: i32) -> (i32, i32) {
    %c0_i32 = arith.constant 0 : i32
    %c0_i32_0 = arith.constant 0 : i32
    %c0_i32_1 = arith.constant 0 : i32
    return %c0_i32, %c0_i32_0 : i32, i32
  }
  func.func @transform_2(%arg0: i32, %arg1: i32) -> (i32, i32) {
    %c0_i32 = arith.constant 0 : i32
    %c0_i32_0 = arith.constant 0 : i32
    %c0_i32_1 = arith.constant 0 : i32
    return %c0_i32, %c0_i32_0 : i32, i32
  }
  func.func @transform_3(%arg0: i32, %arg1: i32) -> (i32, i32, i32) {
    %c0_i32 = arith.constant 0 : i32
    %c0_i32_0 = arith.constant 0 : i32
    return %arg0, %c0_i32, %arg1 : i32, i32, i32
  }
  func.func @transform_4(%arg0: i32, %arg1: i32) -> (i32, i32, i32) {
    %c0_i32 = arith.constant 0 : i32
    %c0_i32_0 = arith.constant 0 : i32
    return %arg0, %c0_i32, %arg1 : i32, i32, i32
  }
}

</mosaic_0001>

<llo_original>
// kernel: tpu_custom_call.1
$region0: #{tpu_custom_call.1}
  #allocation0 [shape = 'u32[]', space=smem, size = 0x4, offset = 0x4, fixed_abs, tag = 'smem constant byte address 0x4 - core index']
  #allocation1 [shape = 'u32[144,128]{1,0:T(1,128)}', space=vmem, size = 0x12000, scoped, tag = 'internal scratch']
  %s0 = inlined_call_operand.hbm [shape: f32[2,8,256], index: 0, kind: input, shape index: {}]
  %s1 = inlined_call_operand.vmem [shape: f32[8,8], index: 1, kind: input, shape index: {}]
  %s2 = inlined_call_operand.vmem [shape: f32[8,1], index: 2, kind: input, shape index: {}]
  %s3 = inlined_call_operand.hbm [shape: f32[2,8,256], index: 3, kind: input, shape index: {}]
  %s4 = inlined_call_operand.hbm [shape: f32[2,8,256], index: 4, kind: output, shape index: {}]
  %s5 = sld [smem:[#allocation0]]
  $region57: #{tpu_custom_call.1} parent=0
    _
  %s7 = ssub.s32 1, %s5
  %s8 = scalar_select 0, %s7, %s5
  $region1: #{tpu_custom_call.1} parent=0
    #allocation2 [shape = 'u8[16384]{0}', space=vmem, size = 0x4000, scoped, tag = 'input window, operand 0']
    #allocation3 [shape = 's32[2]{0}', space=sflag, size = 0x8, scoped, tag = 'scoped memory for tpu_custom_call.1']
    #allocation4 [shape = 's32[2]{0}', space=sflag, size = 0x8, scoped, tag = 'scoped memory for tpu_custom_call.1']
    #allocation5 [shape = 'u8[16384]{0}', space=vmem, size = 0x4000, scoped, tag = 'input window, operand 3']
    #allocation6 [shape = 's32[2]{0}', space=sflag, size = 0x8, scoped, tag = 'scoped memory for tpu_custom_call.1']
    #allocation7 [shape = 'u8[16384]{0}', space=vmem, size = 0x4000, scoped, tag = 'output window, operand 0']
    %9 = vsyncpa [#allocation3], 0
    %s10 = scalar_lea.sflag [#allocation3], 1
    %11 = vsyncpa %s10, 0
    %12 = vsyncpa [#allocation6], 0
    %s13 = scalar_lea.sflag [#allocation6], 1
    %14 = vsyncpa %s13, 0
    %15 = vsyncpa [#allocation4], 0
    %s16 = scalar_lea.sflag [#allocation4], 1
    %17 = vsyncpa %s16, 0
    loop: start=0, step=1, limit=4
    $region2: #{tpu_custom_call.1} parent=1 // loop_pre_header
      _
    $region3: #{tpu_custom_call.1} parent=1 // loop_header
      %s19 = sphi 0, %s23
      %p20 = scmp.ge.s32.totalorder %s19, 4
      %s26 = sphi 0, %s38
      %s27 = sphi 0, %s34
      %s28 = sphi 0, %s26
      %s29 = sphi 0, %s27
      %s30 = sphi 0, %s28
      %s31 = sphi 0, %s29
      %s43 = sphi 0, %s45
      %s46 = sphi 0, %s43
      %s47 = sphi 0, %s46
      %s63 = sphi 0, %s47
      %s67 = sphi 0, %s67
      %s69 = sphi 0, %s67
      %s70 = sphi 0, %s69
      %s84 = sphi 0, %s70
      %s88 = sphi 0, %s88
      %s90 = sphi 0, %s88
      %s91 = sphi 0, %s90
      %s105 = sphi 0, %s91
      %s113 = sphi 0, %s115
      %s116 = sphi 0, %s113
      %s117 = sphi 0, %s116
      %s133 = sphi 0, %s117
      %s141 = sphi 0, %s143
      %s144 = sphi 0, %s141
      %s145 = sphi 0, %s144
      %s161 = sphi 0, %s145
    $region4: #{tpu_custom_call.1} parent=1 // loop_header_branch
      %22 = sbr.rel (%p20) target = $region8
    $region5: #{tpu_custom_call.1} parent=1 // loop_body
      %s24 = ssub.s32 %s19, 1
      %s25 = ssub.s32 %s19, 2
      %s32 = sadd.s32 1, %s27
      %p33 = scmp.ge.s32.totalorder %s32, 1
      %s34 = scalar_select %p33, 0, %s32
      %s35 = sadd.s32 1, %s26
      %s36 = scalar_select %p33, %s35, %s26
      %p37 = scmp.ge.s32.totalorder %s36, 2
      %s38 = scalar_select %p37, 0, %s36
      %s39 = ssub.s32 %s26, %s38
      %s40 = ssub.s32 %s27, %s34
      %s41 = sor.u32 %s39, %s40
      %p42 = scmp.eq.s32.totalorder %s41, 0
      %s44 = sadd.s32 %s43, 1
      %s45 = scalar_select %p42, %s43, %s44
      %p48 = pneg %p42
      %p49 = scmp.eq.s32.totalorder %s19, 1
      %p50 = por %p48, %p49
      %p51 = scmp.ne.s32.totalorder %s43, %s46
      %p52 = scmp.eq.s32.totalorder %s19, 0
      %p53 = por %p51, %p52
      %p54 = scmp.ne.s32.totalorder %s43, %s46
      %p55 = scmp.eq.s32.totalorder %s24, 1
      %p56 = por %p54, %p55
      %p57 = scmp.ne.s32.totalorder %s46, %s47
      %p58 = scmp.eq.s32.totalorder %s24, 0
      %p59 = por %p57, %p58
      %p60 = scmp.ne.s32.totalorder %s46, %s47
      %p61 = scmp.eq.s32.totalorder %s25, 1
      %p62 = por %p60, %p61
      %p64 = scmp.ne.s32.totalorder %s47, %s63
      %p65 = scmp.eq.s32.totalorder %s25, 0
      %p66 = por %p64, %p65
      %s68 = sadd.s32 %s67, 1
      %p71 = scmp.eq.s32.totalorder %s19, 1
      %p72 = scmp.ne.s32.totalorder %s67, %s69
      %p73 = scmp.eq.s32.totalorder %s19, 0
      %p74 = por %p72, %p73
      %p75 = scmp.ne.s32.totalorder %s67, %s69
      %p76 = scmp.eq.s32.totalorder %s24, 1
      %p77 = por %p75, %p76
      %p78 = scmp.ne.s32.totalorder %s69, %s70
      %p79 = scmp.eq.s32.totalorder %s24, 0
      %p80 = por %p78, %p79
      %p81 = scmp.ne.s32.totalorder %s69, %s70
      %p82 = scmp.eq.s32.totalorder %s25, 1
      %p83 = por %p81, %p82
      %p85 = scmp.ne.s32.totalorder %s70, %s84
      %p86 = scmp.eq.s32.totalorder %s25, 0
      %p87 = por %p85, %p86
      %s89 = sadd.s32 %s88, 1
      %p92 = scmp.eq.s32.totalorder %s19, 1
      %p93 = scmp.ne.s32.totalorder %s88, %s90
      %p94 = scmp.eq.s32.totalorder %s19, 0
      %p95 = por %p93, %p94
      %p96 = scmp.ne.s32.totalorder %s88, %s90
      %p97 = scmp.eq.s32.totalorder %s24, 1
      %p98 = por %p96, %p97
      %p99 = scmp.ne.s32.totalorder %s90, %s91
      %p100 = scmp.eq.s32.totalorder %s24, 0
      %p101 = por %p99, %p100
      %p102 = scmp.ne.s32.totalorder %s90, %s91
      %p103 = scmp.eq.s32.totalorder %s25, 1
      %p104 = por %p102, %p103
      %p106 = scmp.ne.s32.totalorder %s91, %s105
      %p107 = scmp.eq.s32.totalorder %s25, 0
      %p108 = por %p106, %p107
      %s109 = ssub.s32 %s26, %s38
      %s110 = ssub.s32 %s27, %s34
      %s111 = sor.u32 %s109, %s110
      %p112 = scmp.eq.s32.totalorder %s111, 0
      %s114 = sadd.s32 %s113, 1
      %s115 = scalar_select %p112, %s113, %s114
      %p118 = pneg %p112
      %p119 = scmp.eq.s32.totalorder %s19, 1
      %p120 = por %p118, %p119
      %p121 = scmp.ne.s32.totalorder %s113, %s116
      %p122 = scmp.eq.s32.totalorder %s19, 0
      %p123 = por %p121, %p122
      %p124 = scmp.ne.s32.totalorder %s113, %s116
      %p125 = scmp.eq.s32.totalorder %s24, 1
      %p126 = por %p124, %p125
      %p127 = scmp.ne.s32.totalorder %s116, %s117
      %p128 = scmp.eq.s32.totalorder %s24, 0
      %p129 = por %p127, %p128
      %p130 = scmp.ne.s32.totalorder %s116, %s117
      %p131 = scmp.eq.s32.totalorder %s25, 1
      %p132 = por %p130, %p131
      %p134 = scmp.ne.s32.totalorder %s117, %s133
      %p135 = scmp.eq.s32.totalorder %s25, 0
      %p136 = por %p134, %p135
      %s137 = ssub.s32 %s26, %s38
      %s138 = ssub.s32 %s27, %s34
      %s139 = sor.u32 %s137, %s138
      %p140 = scmp.eq.s32.totalorder %s139, 0
      %s142 = sadd.s32 %s141, 1
      %s143 = scalar_select %p140, %s141, %s142
      %p146 = pneg %p140
      %p147 = scmp.eq.s32.totalorder %s19, 1
      %p148 = por %p146, %p147
      %p149 = scmp.ne.s32.totalorder %s141, %s144
      %p150 = scmp.eq.s32.totalorder %s19, 0
      %p151 = por %p149, %p150
      %p152 = scmp.ne.s32.totalorder %s141, %s144
      %p153 = scmp.eq.s32.totalorder %s24, 1
      %p154 = por %p152, %p153
      %p155 = scmp.ne.s32.totalorder %s144, %s145
      %p156 = scmp.eq.s32.totalorder %s24, 0
      %p157 = por %p155, %p156
      %p158 = scmp.ne.s32.totalorder %s144, %s145
      %p159 = scmp.eq.s32.totalorder %s25, 1
      %p160 = por %p158, %p159
      %p162 = scmp.ne.s32.totalorder %s145, %s161
      %p163 = scmp.eq.s32.totalorder %s25, 0
      %p164 = por %p162, %p163
      %p165 = scmp.le.s32.totalorder 1, %s19
      %p166 = scmp.lt.s32.totalorder %s19, 3
      %p167 = pnand %p165, %p166
      %p168 = pneg %p167
      // Predicated region
      $region9: #{tpu_custom_call.1} parent=5 // pred_check
        _
      $region10: #{tpu_custom_call.1} parent=5 // pred_check_branch
        %170 = sbr.rel (%p167) target = $region12
      $region11: #{tpu_custom_call.1} parent=5 // pred_region
        %s171 = ssub.s32 %s19, 1
        // Predicated region
        $region13: #{tpu_custom_call.1} parent=11 // pred_check
          %p172 = pneg %p80
        $region14: #{tpu_custom_call.1} parent=11 // pred_check_branch
          %174 = sbr.rel (%p172) target = $region16
        $region15: #{tpu_custom_call.1} parent=11 // pred_region
          _
        $region16: #{tpu_custom_call.1} parent=11 // pred_fallthru
          _
        // Predicated region
        $region17: #{tpu_custom_call.1} parent=11 // pred_check
          %p175 = pneg %p101
        $region18: #{tpu_custom_call.1} parent=11 // pred_check_branch
          %177 = sbr.rel (%p175) target = $region20
        $region19: #{tpu_custom_call.1} parent=11 // pred_region
          _
        $region20: #{tpu_custom_call.1} parent=11 // pred_fallthru
          _
      $region12: #{tpu_custom_call.1} parent=5 // pred_fallthru
        _
      %p178 = scmp.lt.s32.totalorder %s19, 2
      // Predicated region
      $region21: #{tpu_custom_call.1} parent=5 // pred_check
        %p179 = pneg %p178
      $region22: #{tpu_custom_call.1} parent=5 // pred_check_branch
        %181 = sbr.rel (%p179) target = $region24
      $region23: #{tpu_custom_call.1} parent=5 // pred_region
        // Predicated region
        $region25: #{tpu_custom_call.1} parent=23 // pred_check
          %p182 = pneg %p53
        $region26: #{tpu_custom_call.1} parent=23 // pred_check_branch
          %184 = sbr.rel (%p182) target = $region28
        $region27: #{tpu_custom_call.1} parent=23 // pred_region
          %s185 = sand.u32 %s43, 1
          %s186 = scalar_lea.sflag [#allocation3], %s185
          %s187 = sand.u32 %s43, 1
          %s188 = smul.addr %s187, 16
          %s189 = scalar_lea.vmem [#allocation2], %s188
          %s190 = smul.u32 2, %s27
          %s192 = ssub.s32 256, 256
          %193 = vsyncadd %s186, %s192
          %s194 = smul.addr %s26, 2
          %s195 = sadd.s32 %s190, %s194
          %s196 = smul.addr %s195, 128
          %s197 = scalar_lea.hbm %s0, %s196
          %s199 = sshll.u32 %s189, 4
          %s200 = int_to_ptr.vmem [resolvable:$true] %s199
          %202 = dma.hbm_to_vmem [thread:$0]  %s197, 256, %s200, %s186
        $region28: #{tpu_custom_call.1} parent=23 // pred_fallthru
          _
        // Predicated region
        $region29: #{tpu_custom_call.1} parent=23 // pred_check
          %p203 = pneg %p123
        $region30: #{tpu_custom_call.1} parent=23 // pred_check_branch
          %205 = sbr.rel (%p203) target = $region32
        $region31: #{tpu_custom_call.1} parent=23 // pred_region
          %s206 = sand.u32 %s113, 1
          %s207 = scalar_lea.sflag [#allocation6], %s206
          %s208 = sand.u32 %s113, 1
          %s209 = smul.addr %s208, 16
          %s210 = scalar_lea.vmem [#allocation5], %s209
          %s211 = smul.u32 2, %s27
          %s213 = ssub.s32 256, 256
          %214 = vsyncadd %s207, %s213
          %s215 = smul.addr %s26, 2
          %s216 = sadd.s32 %s211, %s215
          %s217 = smul.addr %s216, 128
          %s218 = scalar_lea.hbm %s3, %s217
          %s220 = sshll.u32 %s210, 4
          %s221 = int_to_ptr.vmem [resolvable:$true] %s220
          %223 = dma.hbm_to_vmem [thread:$0]  %s218, 256, %s221, %s207
        $region32: #{tpu_custom_call.1} parent=23 // pred_fallthru
          _
      $region24: #{tpu_custom_call.1} parent=5 // pred_fallthru
        _
      %p224 = scmp.le.s32.totalorder 1, %s19
      %p225 = scmp.lt.s32.totalorder %s19, 3
      %p226 = pnand %p224, %p225
      %p227 = pneg %p226
      // Predicated region
      $region33: #{tpu_custom_call.1} parent=5 // pred_check
        _
      $region34: #{tpu_custom_call.1} parent=5 // pred_check_branch
        %229 = sbr.rel (%p226) target = $region36
      $region35: #{tpu_custom_call.1} parent=5 // pred_region
        %s230 = ssub.s32 %s19, 1
        %s231 = sand.u32 %s46, 1
        %s232 = scalar_lea.sflag [#allocation3], %s231
        %s233 = sand.u32 %s46, 1
        %s234 = smul.addr %s233, 16
        %s235 = scalar_lea.vmem [#allocation2], %s234
        // Predicated region
        $region37: #{tpu_custom_call.1} parent=35 // pred_check
          %p236 = pneg %p59
        $region38: #{tpu_custom_call.1} parent=35 // pred_check_branch
          %238 = sbr.rel (%p236) target = $region40
        $region39: #{tpu_custom_call.1} parent=35 // pred_region
          %239 = dma.done %s232, 256
        $region40: #{tpu_custom_call.1} parent=35 // pred_fallthru
          _
        %s240 = sand.u32 %s116, 1
        %s241 = scalar_lea.sflag [#allocation6], %s240
        %s242 = sand.u32 %s116, 1
        %s243 = smul.addr %s242, 16
        %s244 = scalar_lea.vmem [#allocation5], %s243
        // Predicated region
        $region41: #{tpu_custom_call.1} parent=35 // pred_check
          %p245 = pneg %p129
        $region42: #{tpu_custom_call.1} parent=35 // pred_check_branch
          %247 = sbr.rel (%p245) target = $region44
        $region43: #{tpu_custom_call.1} parent=35 // pred_region
          %248 = dma.done %s241, 256
        $region44: #{tpu_custom_call.1} parent=35 // pred_fallthru
          _
        %s249 = sand.u32 %s46, 1
        %s250 = scalar_lea.sflag [#allocation3], %s249
        %s251 = sand.u32 %s46, 1
        %s252 = smul.addr %s251, 16
        %s253 = scalar_lea.vmem [#allocation2], %s252
        %p254 = pneg %p59
        %p255 = pneg %p56
        %p256 = pneg %p80
        %p257 = pneg %p77
        %p258 = pneg %p101
        %p259 = pneg %p98
        %s260 = sand.u32 %s116, 1
        %s261 = scalar_lea.sflag [#allocation6], %s260
        %s262 = sand.u32 %s116, 1
        %s263 = smul.addr %s262, 16
        %s264 = scalar_lea.vmem [#allocation5], %s263
        %p265 = pneg %p129
        %p266 = pneg %p126
        %p267 = pneg %p157
        %p268 = pneg %p154
        %s269 = sand.u32 %s144, 1
        %s270 = scalar_lea.sflag [#allocation4], %s269
        %s271 = sand.u32 %s144, 1
        %s272 = smul.addr %s271, 16
        %s273 = scalar_lea.vmem [#allocation7], %s272
        %s274 = smul.u32 2, %s29
        %s275 = smul.u32 2, %s29
        %s276 = smul.u32 2, %s29
        %v277 = vld [vmem:[%s1] sm:$0xff]
        %v278 = vld [vmem:[%s2] sm:$0xff]
        %v279 = vld [vmem:[%s235] sm:$0xff]
        %v280 = vld [vmem:[%s235 + $0x8] sm:$0xff]
        %282 = vset.pattern.permute.xlu0 0
        %283 = vperm.xlu0 %282, %v278
        %v284 = vpop.permute.xlu0 %283
        %vm286 = vcmask 64512
        %v288 = vsel %vm286, %v277, 0
        %290 = vmatprep.subr.mxu0 %v280
        %291 = vmatpush1.msra.mxu0 %v279
        %292 = vmatprep.subr.mxu0 0.0
        %293 = vmatpush1.msra.mxu0 0.0
        %294 = vmatprep.subr.mxu0 0.0
        %295 = vmatpush1.msra.mxu0 0.0
        %296 = vmatprep.subr.mxu0 0.0
        %297 = vmatpush1.msra.mxu0 0.0
        %298 = vmatprep.subr.mxu0 0.0
        %299 = vmatpush1.msra.mxu0 0.0
        %300 = vmatprep.subr.mxu0 0.0
        %301 = vmatpush1.msra.mxu0 0.0
        %302 = vmatprep.subr.mxu0 0.0
        %303 = vmatpush1.msra.mxu0 0.0
        %304 = vmatprep.subr.mxu0 0.0
        %305 = vmatpush1.msra.mxu0 0.0
        %306 = vmatprep.subr.mxu0 0.0
        %307 = vmatpush1.msra.mxu0 0.0
        %308 = vmatprep.subr.mxu0 0.0
        %309 = vmatpush1.msra.mxu0 0.0
        %310 = vmatprep.subr.mxu0 0.0
        %311 = vmatpush1.msra.mxu0 0.0
        %312 = vmatprep.subr.mxu0 0.0
        %313 = vmatpush1.msra.mxu0 0.0
        %314 = vmatprep.subr.mxu0 0.0
        %315 = vmatpush1.msra.mxu0 0.0
        %316 = vmatprep.subr.mxu0 0.0
        %317 = vmatpush1.msra.mxu0 0.0
        %318 = vmatprep.subr.mxu0 0.0
        %319 = vmatpush1.msra.mxu0 0.0
        %320 = vmatprep.subr.mxu0 0.0
        %321 = vmatpush1.msra.mxu0 0.0
        %322 = vmatprep.subr.mxu0 0.0
        %323 = vmatpush1.msra.mxu0 0.0
        %324 = vmatprep.subr.mxu0 0.0
        %325 = vmatpush1.msra.mxu0 0.0
        %326 = vmatprep.subr.mxu0 0.0
        %327 = vmatpush1.msra.mxu0 0.0
        %328 = vmatprep.subr.mxu0 0.0
        %329 = vmatpush1.msra.mxu0 0.0
        %330 = vmatprep.subr.mxu0 0.0
        %331 = vmatpush1.msra.mxu0 0.0
        %332 = vmatprep.subr.mxu0 0.0
        %333 = vmatpush1.msra.mxu0 0.0
        %334 = vmatprep.subr.mxu0 0.0
        %335 = vmatpush1.msra.mxu0 0.0
        %336 = vmatprep.subr.mxu0 0.0
        %337 = vmatpush1.msra.mxu0 0.0
        %338 = vmatprep.subr.mxu0 0.0
        %339 = vmatpush1.msra.mxu0 0.0
        %340 = vmatprep.subr.mxu0 0.0
        %341 = vmatpush1.msra.mxu0 0.0
        %342 = vmatprep.subr.mxu0 0.0
        %343 = vmatpush1.msra.mxu0 0.0
        %344 = vmatprep.subr.mxu0 0.0
        %345 = vmatpush1.msra.mxu0 0.0
        %346 = vmatprep.subr.mxu0 0.0
        %347 = vmatpush1.msra.mxu0 0.0
        %348 = vmatprep.subr.mxu0 0.0
        %349 = vmatpush1.msra.mxu0 0.0
        %350 = vmatprep.subr.mxu0 0.0
        %351 = vmatpush1.msra.mxu0 0.0
        %352 = vmatprep.subr.mxu0 0.0
        %353 = vmatpush1.msra.mxu0 0.0
        %354 = vmatprep.mubr.f32.mxu0 0.0
        %355 = vmatmul.mubr.f32.gmra.mrb[0].mxu0 %v288
        %v356 = vpop.f32.mrb[0].mxu0
        %v357 = vadd.f32 %v284, %v356
        %v358 = vpop.f32.mrb[0].mxu0
        %v359 = vadd.f32 %v284, %v358
        %360 = vdwg.mxu0
        %v361 = vld [vmem:[%s244] sm:$0xff]
        %v362 = vld [vmem:[%s244 + $0x8] sm:$0xff]
        %v363 = vadd.f32 %v357, %v361
        %v364 = vadd.f32 %v359, %v362
        %365 = vst [vmem:[%s273] sm:$0xff] %v363
        %366 = vst [vmem:[%s273 + $0x8] sm:$0xff] %v364
        %s367 = sand.u32 %s144, 1
        %s368 = scalar_lea.sflag [#allocation4], %s367
        %s369 = sand.u32 %s144, 1
        %s370 = smul.addr %s369, 16
        %s371 = scalar_lea.vmem [#allocation7], %s370
        // Predicated region
        $region45: #{tpu_custom_call.1} parent=35 // pred_check
          %p372 = pneg %p154
        $region46: #{tpu_custom_call.1} parent=35 // pred_check_branch
          %374 = sbr.rel (%p372) target = $region48
        $region47: #{tpu_custom_call.1} parent=35 // pred_region
          %s375 = smul.u32 2, %s29
          %s377 = ssub.s32 256, 256
          %378 = vsyncadd %s368, %s377
          %s379 = smul.addr %s28, 2
          %s380 = sadd.s32 %s375, %s379
          %s381 = smul.addr %s380, 128
          %s382 = scalar_lea.hbm %s4, %s381
          %s384 = sshll.u32 %s371, 4
          %s385 = int_to_ptr.vmem [resolvable:$true] %s384
          %387 = dma.vmem_to_hbm [thread:$0]  %s385, 256, %s382, %s368
        $region48: #{tpu_custom_call.1} parent=35 // pred_fallthru
          _
      $region36: #{tpu_custom_call.1} parent=5 // pred_fallthru
        _
      %p388 = scmp.le.s32.totalorder 2, %s19
      // Predicated region
      $region49: #{tpu_custom_call.1} parent=5 // pred_check
        %p389 = pneg %p388
      $region50: #{tpu_custom_call.1} parent=5 // pred_check_branch
        %391 = sbr.rel (%p389) target = $region52
      $region51: #{tpu_custom_call.1} parent=5 // pred_region
        %s392 = ssub.s32 %s19, 2
        // Predicated region
        $region53: #{tpu_custom_call.1} parent=51 // pred_check
          %p393 = pneg %p160
        $region54: #{tpu_custom_call.1} parent=51 // pred_check_branch
          %395 = sbr.rel (%p393) target = $region56
        $region55: #{tpu_custom_call.1} parent=51 // pred_region
          %s396 = sand.u32 %s145, 1
          %s397 = scalar_lea.sflag [#allocation4], %s396
          %s398 = sand.u32 %s145, 1
          %s399 = smul.addr %s398, 16
          %s400 = scalar_lea.vmem [#allocation7], %s399
          %401 = dma.done %s397, 256
        $region56: #{tpu_custom_call.1} parent=51 // pred_fallthru
          _
      $region52: #{tpu_custom_call.1} parent=5 // pred_fallthru
        _
    $region6: #{tpu_custom_call.1} parent=1 // loop_footer
      %s23 = sadd.s32 1, %s19
    $region7: #{tpu_custom_call.1} parent=1 // loop_footer_branch
      %18 = sbr.rel target = $region3
    $region8: #{tpu_custom_call.1} parent=1 // loop_exit
      _
    %402 = vsyncpa [#allocation3], 1
    %s403 = scalar_lea.sflag [#allocation3], 1
    %404 = vsyncpa %s403, 1
    %405 = vsyncpa [#allocation6], 1
    %s406 = scalar_lea.sflag [#allocation6], 1
    %407 = vsyncpa %s406, 1
    %408 = vsyncpa [#allocation4], 1
    %s409 = scalar_lea.sflag [#allocation4], 1
    %410 = vsyncpa %s409, 1

</llo_original>
